<compile_context>
chip_gen: v6e
topology: v6e:2x2x1
jax: 0.10.0
libtpu: 0.0.40
codegen_flags: <defaults>
</compile_context>

<pallas_src>
import math
import jax
import jax.numpy as jnp
from jax.experimental import pallas as pl
from jax.experimental.pallas import tpu as pltpu


def _round_up(n, m):
    return ((n + m - 1) // m) * m


def _cdiv(a, b):
    return (a + b - 1) // b


def _vmem_budget_and_limit():
    """Generation-aware scoped-VMEM budget (tile sizing) and compiler limit.
    v5e/v6e: 128 MiB physical VMEM; v7x: 64 MiB per TensorCore.  Fall back to
    v7x-safe numbers if the hardware query fails."""
    try:
        phys = pltpu.get_tpu_info().vmem_capacity_bytes
    except Exception:
        phys = None
    if phys is not None and phys >= 100 * 2**20:        # v5e / v6e
        return 96 * 2**20, 108 * 2**20
    return 44 * 2**20, 50 * 2**20                        # v7x / unknown


def _pick_tc(Cp, cap):
    """Largest tc <= cap dividing Cp; prefer multiples of 256 (full MXU passes
    on v6e/v7x 2x256x256 MXUs), fall back to multiples of 128 (fine on v5e)."""
    cap = max(128, min(cap, Cp))
    for step in (256, 128):
        tc = (cap // step) * step
        while tc >= step:
            if Cp % tc == 0:
                return tc
            tc -= step
    return 128


def _apply_megacore(tm, M):
    # v7x has 2 TensorCores; >= 4 row tiles keeps each core's x/out pipeline
    # double-buffered and load-balanced.  No-op for small M / single-TC chips.
    if M >= 1024 and _cdiv(M, tm) < 4:
        tm = max(8, _round_up(_cdiv(M, 4), 8))
    return tm


def _choose_plan(M, Hp, Cp, x_bytes, w_bytes, budget, max_tc=None):
    """Pick (tm, tc, weights_resident).  All block shapes stay (8,128)-aligned."""

    def est_resident(tm_):
        b = Hp * Cp * w_bytes                  # W1 (single-buffered, grid-const)
        b += Cp * Hp * w_bytes                 # W2 (single-buffered, grid-const)
        b += 8 * Hp * 4                        # folded bias
        b += 2 * tm_ * Hp * x_bytes            # x tiles (double-buffered)
        b += 2 * tm_ * 8 * 4                   # importance tiles
        b += 2 * tm_ * Hp * x_bytes            # output tiles
        b += tm_ * (2 * Hp + Cp) * 4           # live f32 intermediates headroom
        return b

    def est_tiled(tm_, tc_):
        b = 2 * Hp * tc_ * w_bytes             # W1 column tiles (double-buffered)
        b += 2 * tc_ * Hp * w_bytes            # W2 row tiles
        b += 2 * 8 * Hp * 4                    # folded bias
        b += 2 * tm_ * Hp * x_bytes            # x tiles
        b += 2 * tm_ * 8 * 4                   # importance tiles
        b += 2 * tm_ * Hp * x_bytes            # output tiles
        b += tm_ * Hp * 4                      # f32 accumulator scratch
        b += tm_ * Hp * w_bytes                # cached matmul_dtype xw scratch
        b += tm_ * (Hp + tc_) * 4              # live f32 intermediates headroom
        return b

    if max_tc is None:
        # Weight-resident layout (tc == Cp): weights DMA'd once, MXU-bound.
        tm = min(1024, _round_up(M, 8))
        while tm > 8 and est_resident(tm) > budget:
            tm = _round_up(tm // 2, 8)
        if est_resident(tm) <= budget:
            return _apply_megacore(tm, M), Cp, True

    # Fallback: stream W1/W2 in C tiles (re-fetched once per row tile).
    tc = _pick_tc(Cp, 512 if max_tc is None else max_tc)
    tm = min(1024, _round_up(M, 8))
    while tm > 8 and est_tiled(tm, tc) > budget:
        tm = _round_up(tm // 2, 8)
    while tc > 128 and est_tiled(tm, tc) > budget:
        tc = _pick_tc(Cp, tc - 128)
    return _apply_megacore(tm, M), tc, False


def _make_resident_kernel(has_importance, matmul_dtype):
    """Single-shot kernel: full W1/W2 resident in VMEM, 1-D grid over row tiles."""
    def kernel(*refs):
        if has_importance:
            x_ref, imp_ref, w1_ref, w2_ref, b2_ref, o_ref = refs
        else:
            x_ref, w1_ref, w2_ref, b2_ref, o_ref = refs
        xw = x_ref[...].astype(jnp.float32)                         # [tm, Hp]
        if has_importance:
            xw = xw * imp_ref[...].astype(jnp.float32)              # [tm, 1] bcast
        c = jnp.dot(xw.astype(matmul_dtype), w1_ref[...],
                    preferred_element_type=jnp.float32)             # [tm, Cp]
        d = jnp.dot(c.astype(matmul_dtype), w2_ref[...],
                    preferred_element_type=jnp.float32)             # [tm, Hp]
        o_ref[...] = (xw + d + b2_ref[...].astype(jnp.float32)).astype(o_ref.dtype)
    return kernel


def _make_tiled_kernel(has_importance, matmul_dtype):
    """C-tiled kernel: 2-D grid (row tiles x C tiles), f32 accumulator."""
    def kernel(*refs):
        if has_importance:
            x_ref, imp_ref, w1_ref, w2_ref, b2_ref, o_ref, acc_ref, xw_ref = refs
        else:
            x_ref, w1_ref, w2_ref, b2_ref, o_ref, acc_ref, xw_ref = refs
        kc = pl.program_id(1)

        @pl.when(kc == 0)
        def _():
            xw = x_ref[...].astype(jnp.float32)
            if has_importance:
                xw = xw * imp_ref[...].astype(jnp.float32)
            xw_ref[...] = xw.astype(matmul_dtype)       # reused by every kc step
            acc_ref[...] = xw + b2_ref[...].astype(jnp.float32)   # residual + bias

        c = jnp.dot(xw_ref[...], w1_ref[...],
                    preferred_element_type=jnp.float32)             # [tm, tc]
        acc_ref[...] += jnp.dot(c.astype(matmul_dtype), w2_ref[...],
                                preferred_element_type=jnp.float32)  # [tm, Hp]

        @pl.when(kc == pl.num_programs(1) - 1)
        def _():
            o_ref[...] = acc_ref[...].astype(o_ref.dtype)
    return kernel


def pyramid_compression(x, w1, b1, w2, b2, importance=None,
                        matmul_dtype=jnp.bfloat16, max_tc=None,
                        vmem_budget=None):
    """x: [B, S, H]; w1: [H, C]; b1: [C]; w2: [C, H]; b2: [H];
    importance: optional [B, S].  Returns [B, S, H].

    matmul_dtype=bf16 runs the MXU in bf16 with f32 accumulation (documented
    approximation vs the f32 PyTorch reference); pass jnp.float32 for exact.
    max_tc forces the C-tiled fallback (mainly for testing / huge weights)."""
    B, S, H = x.shape
    C = w1.shape[1]
    M = B * S
    has_importance = importance is not None

    # Lane-dense padding: H and C rounded up to multiples of 128 so matmul K/N
    # dims and the output last dim are full-lane (unmasked) accesses.
    Hp = _round_up(H, 128)
    Cp = _round_up(C, 128)

    x_bytes = jnp.dtype(x.dtype).itemsize
    w_bytes = jnp.dtype(matmul_dtype).itemsize
    gen_budget, vmem_limit = _vmem_budget_and_limit()
    budget = gen_budget if vmem_budget is None else vmem_budget
    tm, tc, resident = _choose_plan(M, Hp, Cp, x_bytes, w_bytes, budget,
                                    max_tc=max_tc)
    Mp = _round_up(M, tm)

    # TODO(synk): for inference loops, hoist the weight pad/cast + bias fold out
    # of the per-call path (pre-padded [Hp,Cp]/[Cp,Hp] matmul_dtype weights are
    # accepted as-is and skip the pad/cast below).
    x2 = x.reshape(M, H)
    if Mp != M or Hp != H:
        x2 = jnp.pad(x2, ((0, Mp - M), (0, Hp - H)))
    if w1.shape == (Hp, Cp) and w1.dtype == matmul_dtype:
        w1p = w1
    else:
        w1p = jnp.pad(w1, ((0, Hp - H), (0, Cp - C))).astype(matmul_dtype)
    if w2.shape == (Cp, Hp) and w2.dtype == matmul_dtype:
        w2p = w2
    else:
        w2p = jnp.pad(w2, ((0, Cp - C), (0, Hp - H))).astype(matmul_dtype)
    # Fold b1 into the output bias: d = (xw@W1 + b1)@W2 + b2
    #                                 = (xw@W1)@W2 + (b1@W2 + b2).  Exact.
    b2_eff = (b1.astype(jnp.float32) @ w2.astype(jnp.float32)
              + b2.astype(jnp.float32))
    b2p = b2_eff.reshape(1, H)
    if Hp != H:
        b2p = jnp.pad(b2p, ((0, 0), (0, Hp - H)))

    if resident:
        grid = (Mp // tm,)
        in_specs = [pl.BlockSpec((tm, Hp), lambda i: (i, 0))]
        if has_importance:
            in_specs.append(pl.BlockSpec((tm, 1), lambda i: (i, 0)))
        # Grid-constant weight/bias blocks: single-buffered, DMA'd exactly once.
        in_specs += [
            pl.BlockSpec((Hp, Cp), lambda i: (0, 0), pipeline_mode=pl.Buffered(1)),
            pl.BlockSpec((Cp, Hp), lambda i: (0, 0), pipeline_mode=pl.Buffered(1)),
            pl.BlockSpec((1, Hp), lambda i: (0, 0), pipeline_mode=pl.Buffered(1)),
        ]
        out_specs = pl.BlockSpec((tm, Hp), lambda i: (i, 0))
        scratch_shapes = []
        dim_sem = ("parallel",)
        kernel = _make_resident_kernel(has_importance, matmul_dtype)
        weight_traffic = (w1p.size + w2p.size) * w_bytes
    else:
        grid = (Mp // tm, Cp // tc)
        in_specs = [pl.BlockSpec((tm, Hp), lambda i, kc: (i, 0))]
        if has_importance:
            in_specs.append(pl.BlockSpec((tm, 1), lambda i, kc: (i, 0)))
        # TODO(synk): if an xprof trace shows the weight DMA exposed per kc
        # step, raise W1/W2 to pipeline_mode=pl.Buffered(3).
        in_specs += [
            pl.BlockSpec((Hp, tc), lambda i, kc: (0, kc)),   # W1 column tile
            pl.BlockSpec((tc, Hp), lambda i, kc: (kc, 0)),   # W2 row tile
            pl.BlockSpec((1, Hp), lambda i, kc: (0, 0)),     # folded bias
        ]
        out_specs = pl.BlockSpec((tm, Hp), lambda i, kc: (i, 0))
        scratch_shapes = [pltpu.VMEM((tm, Hp), jnp.float32),    # accumulator
                          pltpu.VMEM((tm, Hp), matmul_dtype)]   # cached xw
        dim_sem = ("parallel", "arbitrary")
        kernel = _make_tiled_kernel(has_importance, matmul_dtype)
        # Weights are re-streamed from HBM once per row tile in this layout.
        weight_traffic = (Mp // tm) * (w1p.size + w2p.size) * w_bytes

    args = [x2]
    if has_importance:
        imp2 = importance.reshape(M, 1).astype(jnp.float32)
        if Mp != M:
            imp2 = jnp.pad(imp2, ((0, Mp - M), (0, 0)))
        args.append(imp2)
    args += [w1p, w2p, b2p]

    flops = 4 * Mp * Hp * Cp                         # two MxHxC matmuls
    bytes_accessed = (2 * Mp * Hp * x_bytes          # x in + out
                      + weight_traffic + b2p.size * 4
                      + (Mp * 4 if has_importance else 0))

    out = pl.pallas_call(
        kernel,
        out_shape=jax.ShapeDtypeStruct((Mp, Hp), x.dtype),
        grid_spec=pltpu.PrefetchScalarGridSpec(
            num_scalar_prefetch=0,
            grid=grid,
            in_specs=in_specs,
            out_specs=out_specs,
            scratch_shapes=scratch_shapes),
        compiler_params=pltpu.CompilerParams(
            dimension_semantics=dim_sem,
            vmem_limit_bytes=int(vmem_limit)),
        cost_estimate=pl.CostEstimate(
            flops=int(flops), transcendentals=0,
            bytes_accessed=int(bytes_accessed)),
    )(*args)

    return out[:M, :H].reshape(B, S, H)


def init_params(key, hidden_size, compression_ratio=0.5):
    """Deterministic init mirroring nn.Linear default (uniform +-1/sqrt(fan_in)).
    Weights stored pre-transposed ([in, out]) for the kernel's row-major matmul."""
    C = int(hidden_size * compression_ratio)
    k1, k2, k3, k4 = jax.random.split(key, 4)
    bound1 = 1.0 / math.sqrt(hidden_size)
    bound2 = 1.0 / math.sqrt(C)
    w1 = jax.random.uniform(k1, (hidden_size, C), jnp.float32, -bound1, bound1)
    b1 = jax.random.uniform(k2, (C,), jnp.float32, -bound1, bound1)
    w2 = jax.random.uniform(k3, (C, hidden_size), jnp.float32, -bound2, bound2)
    b2 = jax.random.uniform(k4, (hidden_size,), jnp.float32, -bound2, bound2)
    importance_weights = jnp.ones((hidden_size,), jnp.float32)  # unused in forward (parity only)
    return w1, b1, w2, b2, importance_weights


def _reference(x, w1, b1, w2, b2, importance=None):
    if importance is not None:
        x = x * importance[..., None]
    c = x @ w1 + b1
    d = c @ w2 + b2
    return x + d


if __name__ == "__main__":
    B, S, H = 2, 8, 32
    ratio = 0.5

    key = jax.random.PRNGKey(0)
    kx, kimp, kparams = jax.random.split(key, 3)

    x = jax.random.normal(kx, (B, S, H), dtype=jnp.float32)
    importance = jax.random.uniform(kimp, (B, S), dtype=jnp.float32)
    w1, b1, w2, b2, _imp_w = init_params(kparams, H, ratio)
    ref = _reference(x, w1, b1, w2, b2, importance=importance)

    # f32-MXU, weight-resident path: tight check against the reference.
    out = jax.block_until_ready(
        pyramid_compression(x, w1, b1, w2, b2, importance=importance,
                            matmul_dtype=jnp.float32))
    assert out.shape == (B, S, H)
    assert jnp.allclose(out, ref, atol=1e-4, rtol=1e-4), "mismatch vs reference (f32)"

    # Default bf16-MXU path (f32 accumulation): looser tolerance for bf16 rounding.
    out_bf16 = jax.block_until_ready(
        pyramid_compression(x, w1, b1, w2, b2, importance=importance))
    assert jnp.allclose(out_bf16, ref, atol=1e-1, rtol=1e-1), "mismatch vs reference (bf16)"

    # importance=None fast path (no importance DMA / multiply).
    out2 = jax.block_until_ready(
        pyramid_compression(x, w1, b1, w2, b2, matmul_dtype=jnp.float32))
    ref2 = _reference(x, w1, b1, w2, b2)
    assert jnp.allclose(out2, ref2, atol=1e-4, rtol=1e-4), "mismatch vs reference (no importance)"

    # C-tiled fallback path (exercised via max_tc): H=512 -> C=256, tc=128 -> 2 kc steps.
    H2 = 512
    kx2, kp2 = jax.random.split(jax.random.PRNGKey(1))
    x_big = jax.random.normal(kx2, (B, S, H2), dtype=jnp.float32)
    w1b, b1b, w2b, b2b, _ = init_params(kp2, H2, 0.5)
    out3 = jax.block_until_ready(
        pyramid_compression(x_big, w1b, b1b, w2b, b2b,
                            matmul_dtype=jnp.float32, max_tc=128))
    ref3 = _reference(x_big, w1b, b1b, w2b, b2b)
    assert out3.shape == (B, S, H2)
    assert jnp.allclose(out3, ref3, atol=1e-3, rtol=1e-3), "mismatch vs reference (C-tiled)"

    print("KERNEL_OK")
</pallas_src>

<mosaic_0001>
module attributes {stable_mosaic.version = 11 : i64} {
  func.func @kernel(%arg0: i32, %arg1: memref<16x128xf32, #tpu.memory_space<vmem>>, %arg2: memref<16x1xf32, #tpu.memory_space<vmem>>, %arg3: memref<128x128xf32, #tpu.memory_space<vmem>>, %arg4: memref<128x128xf32, #tpu.memory_space<vmem>>, %arg5: memref<1x128xf32, #tpu.memory_space<vmem>>, %arg6: memref<16x128xf32, #tpu.memory_space<vmem>>) attributes {dimension_semantics = [#tpu.dimension_semantics<parallel>], iteration_bounds = array<i64: 1>, scalar_prefetch = 0 : i64, scratch_operands = 0 : i64, tpu.core_type = #tpu.core_type<tc>, window_params = [{transform_indices = @transform_0, window_bounds = array<i64: 16, 128>}, {transform_indices = @transform_1, window_bounds = array<i64: 16, 1>}, {pipeline_mode = #tpu.pipeline_mode<synchronous>, transform_indices = @transform_2, window_bounds = array<i64: 128, 128>}, {pipeline_mode = #tpu.pipeline_mode<synchronous>, transform_indices = @transform_3, window_bounds = array<i64: 128, 128>}, {pipeline_mode = #tpu.pipeline_mode<synchronous>, transform_indices = @transform_4, window_bounds = array<i64: 1, 128>}, {transform_indices = @transform_5, window_bounds = array<i64: 16, 128>}]} {
    %c0 = arith.constant 0 : index
    %c0_0 = arith.constant 0 : index
    %0 = vector.load %arg1[%c0, %c0_0] : memref<16x128xf32, #tpu.memory_space<vmem>>, vector<16x128xf32>
    %c0_1 = arith.constant 0 : index
    %c0_2 = arith.constant 0 : index
    %1 = vector.load %arg2[%c0_1, %c0_2] : memref<16x1xf32, #tpu.memory_space<vmem>>, vector<16x1xf32>
    %2 = vector.broadcast %1 : vector<16x1xf32> to vector<16x128xf32>
    %3 = arith.mulf %0, %2 : vector<16x128xf32>
    %c0_3 = arith.constant 0 : index
    %c0_4 = arith.constant 0 : index
    %4 = vector.load %arg3[%c0_3, %c0_4] : memref<128x128xf32, #tpu.memory_space<vmem>>, vector<128x128xf32>
    %cst = arith.constant dense<0.000000e+00> : vector<16x128xf32>
    %5 = tpu.matmul %3, %4, %cst {dimension_numbers = #tpu.dot_dimension_numbers<[1], [0], [0], [1], [0, 0, 1, 1], [], []>} : vector<16x128xf32>, vector<128x128xf32>, vector<16x128xf32> -> vector<16x128xf32>
    %c0_5 = arith.constant 0 : index
    %c0_6 = arith.constant 0 : index
    %6 = vector.load %arg4[%c0_5, %c0_6] : memref<128x128xf32, #tpu.memory_space<vmem>>, vector<128x128xf32>
    %cst_7 = arith.constant dense<0.000000e+00> : vector<16x128xf32>
    %7 = tpu.matmul %5, %6, %cst_7 {dimension_numbers = #tpu.dot_dimension_numbers<[1], [0], [0], [1], [0, 0, 1, 1], [], []>} : vector<16x128xf32>, vector<128x128xf32>, vector<16x128xf32> -> vector<16x128xf32>
    %8 = arith.addf %3, %7 : vector<16x128xf32>
    %c0_8 = arith.constant 0 : index
    %c0_9 = arith.constant 0 : index
    %9 = vector.load %arg5[%c0_8, %c0_9] : memref<1x128xf32, #tpu.memory_space<vmem>>, vector<1x128xf32>
    %10 = vector.broadcast %9 : vector<1x128xf32> to vector<16x128xf32>
    %11 = arith.addf %8, %10 : vector<16x128xf32>
    %c0_10 = arith.constant 0 : index
    %c0_11 = arith.constant 0 : index
    %12 = vector.load %arg6[%c0_10, %c0_11] : memref<16x128xf32, #tpu.memory_space<vmem>>, vector<16x128xf32>
    tpu.vector_store %arg6[%c0_10, %c0_11], %11 {strides = array<i32>} : memref<16x128xf32, #tpu.memory_space<vmem>>, vector<16x128xf32>,
    return
  }
  func.func @transform_0(%arg0: i32) -> (i32, i32) {
    %c0_i32 = arith.constant 0 : i32
    %c0_i32_0 = arith.constant 0 : i32
    return %arg0, %c0_i32 : i32, i32
  }
  func.func @transform_1(%arg0: i32) -> (i32, i32) {
    %c0_i32 = arith.constant 0 : i32
    %c0_i32_0 = arith.constant 0 : i32
    return %arg0, %c0_i32 : i32, i32
  }
  func.func @transform_2(%arg0: i32) -> (i32, i32) {
    %c0_i32 = arith.constant 0 : i32
    %c0_i32_0 = arith.constant 0 : i32
    %c0_i32_1 = arith.constant 0 : i32
    return %c0_i32, %c0_i32_0 : i32, i32
  }
  func.func @transform_3(%arg0: i32) -> (i32, i32) {
    %c0_i32 = arith.constant 0 : i32
    %c0_i32_0 = arith.constant 0 : i32
    %c0_i32_1 = arith.constant 0 : i32
    return %c0_i32, %c0_i32_0 : i32, i32
  }
  func.func @transform_4(%arg0: i32) -> (i32, i32) {
    %c0_i32 = arith.constant 0 : i32
    %c0_i32_0 = arith.constant 0 : i32
    %c0_i32_1 = arith.constant 0 : i32
    return %c0_i32, %c0_i32_0 : i32, i32
  }
  func.func @transform_5(%arg0: i32) -> (i32, i32) {
    %c0_i32 = arith.constant 0 : i32
    %c0_i32_0 = arith.constant 0 : i32
    return %arg0, %c0_i32 : i32, i32
  }
}

</mosaic_0001>

<llo_original>
// kernel: tpu_custom_call.1
$region0: #{tpu_custom_call.1}
  #allocation0 [shape = 'u32[]', space=smem, size = 0x4, offset = 0x4, fixed_abs, tag = 'smem constant byte address 0x4 - core index']
  #allocation1 [shape = 'u32[144,128]{1,0:T(1,128)}', space=vmem, size = 0x12000, scoped, tag = 'internal scratch']
  %s0 = inlined_call_operand.vmem [shape: f32[16,128], index: 0, kind: input, shape index: {}]
  %s1 = inlined_call_operand.vmem [shape: f32[16,1], index: 1, kind: input, shape index: {}]
  %s2 = inlined_call_operand.hbm [shape: f32[128,128], index: 2, kind: input, shape index: {}]
  %s3 = inlined_call_operand.hbm [shape: f32[128,128], index: 3, kind: input, shape index: {}]
  %s4 = inlined_call_operand.vmem [shape: f32[1,128], index: 4, kind: input, shape index: {}]
  %s5 = inlined_call_operand.hbm [shape: f32[16,128], index: 5, kind: output, shape index: {}]
  %s6 = sld [smem:[#allocation0]]
  $region38: #{tpu_custom_call.1} parent=0
    _
  %s8 = ssub.s32 1, %s6
  %s9 = scalar_select 0, %s8, %s6
  $region1: #{tpu_custom_call.1} parent=0
    #allocation2 [shape = 'u8[65536]{0}', space=vmem, size = 0x10000, scoped, tag = 'input window, operand 2, single buffered']
    #allocation3 [shape = 's32[1]{0}', space=sflag, size = 0x4, scoped, tag = 'scoped memory for tpu_custom_call.1']
    #allocation4 [shape = 's32[1]{0}', space=sflag, size = 0x4, scoped, tag = 'scoped memory for tpu_custom_call.1']
    #allocation5 [shape = 'u8[65536]{0}', space=vmem, size = 0x10000, scoped, tag = 'input window, operand 3, single buffered']
    #allocation6 [shape = 's32[1]{0}', space=sflag, size = 0x4, scoped, tag = 'scoped memory for tpu_custom_call.1']
    #allocation7 [shape = 'u8[8192]{0}', space=vmem, size = 0x2000, scoped, tag = 'output window, operand 0, single buffered']
    %10 = vsyncpa [#allocation3], 0
    %11 = vsyncpa [#allocation6], 0
    %12 = vsyncpa [#allocation4], 0
    // Predicated region
    $region2: #{tpu_custom_call.1} parent=1 // pred_check
      _
    $region3: #{tpu_custom_call.1} parent=1 // pred_check_branch
      %14 = sbr.rel (0) target = $region5
    $region4: #{tpu_custom_call.1} parent=1 // pred_region
      _
    $region5: #{tpu_custom_call.1} parent=1 // pred_fallthru
      _
    // Predicated region
    $region6: #{tpu_custom_call.1} parent=1 // pred_check
      _
    $region7: #{tpu_custom_call.1} parent=1 // pred_check_branch
      %16 = sbr.rel (0) target = $region9
    $region8: #{tpu_custom_call.1} parent=1 // pred_region
      _
    $region9: #{tpu_custom_call.1} parent=1 // pred_fallthru
      _
    // Predicated region
    $region10: #{tpu_custom_call.1} parent=1 // pred_check
      _
    $region11: #{tpu_custom_call.1} parent=1 // pred_check_branch
      %18 = sbr.rel (0) target = $region13
    $region12: #{tpu_custom_call.1} parent=1 // pred_region
      %s20 = ssub.s32 2048, 2048
      %21 = vsyncadd [#allocation3], %s20
      %s22 = sshll.u32 [#allocation2], 4
      %s23 = int_to_ptr.vmem [resolvable:$true] %s22
      %28 = dma.hbm_to_vmem [thread:$0]  %s2, 2048, %s23, [#allocation3], 128, 128, 8
    $region13: #{tpu_custom_call.1} parent=1 // pred_fallthru
      _
    // Predicated region
    $region14: #{tpu_custom_call.1} parent=1 // pred_check
      _
    $region15: #{tpu_custom_call.1} parent=1 // pred_check_branch
      %30 = sbr.rel (0) target = $region17
    $region16: #{tpu_custom_call.1} parent=1 // pred_region
      %s32 = ssub.s32 2048, 2048
      %33 = vsyncadd [#allocation6], %s32
      %s34 = sshll.u32 [#allocation5], 4
      %s35 = int_to_ptr.vmem [resolvable:$true] %s34
      %40 = dma.hbm_to_vmem [thread:$0]  %s3, 2048, %s35, [#allocation6], 128, 128, 8
    $region17: #{tpu_custom_call.1} parent=1 // pred_fallthru
      _
    // Predicated region
    $region18: #{tpu_custom_call.1} parent=1 // pred_check
      _
    $region19: #{tpu_custom_call.1} parent=1 // pred_check_branch
      %42 = sbr.rel (0) target = $region21
    $region20: #{tpu_custom_call.1} parent=1 // pred_region
      _
    $region21: #{tpu_custom_call.1} parent=1 // pred_fallthru
      _
    // Predicated region
    $region22: #{tpu_custom_call.1} parent=1 // pred_check
      _
    $region23: #{tpu_custom_call.1} parent=1 // pred_check_branch
      %44 = sbr.rel (0) target = $region25
    $region24: #{tpu_custom_call.1} parent=1 // pred_region
      %45 = dma.done [#allocation3], 2048
    $region25: #{tpu_custom_call.1} parent=1 // pred_fallthru
      _
    // Predicated region
    $region26: #{tpu_custom_call.1} parent=1 // pred_check
      _
    $region27: #{tpu_custom_call.1} parent=1 // pred_check_branch
      %47 = sbr.rel (0) target = $region29
    $region28: #{tpu_custom_call.1} parent=1 // pred_region
      %48 = dma.done [#allocation6], 2048
    $region29: #{tpu_custom_call.1} parent=1 // pred_fallthru
      _
    %v49 = vld [vmem:[%s0] sm:$0xff]
    %v50 = vld [vmem:[%s0 + $0x8] sm:$0xff]
    %v51 = vld [vmem:[%s1] sm:$0xff]
    %v52 = vld [vmem:[%s1 + $0x8] sm:$0xff]
    %54 = vset.pattern.permute.xlu0 0
    %55 = vperm.xlu0 %54, %v51
    %v56 = vpop.permute.xlu0 %55
    %59 = vset.pattern.permute.xlu0 0
    %60 = vperm.xlu0 %59, %v52
    %v61 = vpop.permute.xlu0 %60
    %v63 = vmul.f32 %v49, %v56
    %v64 = vmul.f32 %v50, %v61
    %v65 = vld [vmem:[#allocation2] sm:$0xff]
    %v66 = vld [vmem:[#allocation2 + $0x8] sm:$0xff]
    %v67 = vld [vmem:[#allocation2 + $0x10] sm:$0xff]
    %v68 = vld [vmem:[#allocation2 + $0x18] sm:$0xff]
    %v69 = vld [vmem:[#allocation2 + $0x20] sm:$0xff]
    %v70 = vld [vmem:[#allocation2 + $0x28] sm:$0xff]
    %v71 = vld [vmem:[#allocation2 + $0x30] sm:$0xff]
    %v72 = vld [vmem:[#allocation2 + $0x38] sm:$0xff]
    %v73 = vld [vmem:[#allocation2 + $0x40] sm:$0xff]
    %v74 = vld [vmem:[#allocation2 + $0x48] sm:$0xff]
    %v75 = vld [vmem:[#allocation2 + $0x50] sm:$0xff]
    %v76 = vld [vmem:[#allocation2 + $0x58] sm:$0xff]
    %v77 = vld [vmem:[#allocation2 + $0x60] sm:$0xff]
    %v78 = vld [vmem:[#allocation2 + $0x68] sm:$0xff]
    %v79 = vld [vmem:[#allocation2 + $0x70] sm:$0xff]
    %v80 = vld [vmem:[#allocation2 + $0x78] sm:$0xff]
    %81 = vmatprep.subr.mxu0 0.0
    %82 = vmatpush1.msra.mxu0 %v80
    %83 = vmatprep.subr.mxu0 0.0
    %84 = vmatpush1.msra.mxu0 %v79
    %85 = vmatprep.subr.mxu0 0.0
    %86 = vmatpush1.msra.mxu0 %v78
    %87 = vmatprep.subr.mxu0 0.0
    %88 = vmatpush1.msra.mxu0 %v77
    %89 = vmatprep.subr.mxu0 0.0
    %90 = vmatpush1.msra.mxu0 %v76
    %91 = vmatprep.subr.mxu0 0.0
    %92 = vmatpush1.msra.mxu0 %v75
    %93 = vmatprep.subr.mxu0 0.0
    %94 = vmatpush1.msra.mxu0 %v74
    %95 = vmatprep.subr.mxu0 0.0
    %96 = vmatpush1.msra.mxu0 %v73
    %97 = vmatprep.subr.mxu0 0.0
    %98 = vmatpush1.msra.mxu0 %v72
    %99 = vmatprep.subr.mxu0 0.0
    %100 = vmatpush1.msra.mxu0 %v71
    %101 = vmatprep.subr.mxu0 0.0
    %102 = vmatpush1.msra.mxu0 %v70
    %103 = vmatprep.subr.mxu0 0.0
    %104 = vmatpush1.msra.mxu0 %v69
    %105 = vmatprep.subr.mxu0 0.0
    %106 = vmatpush1.msra.mxu0 %v68
    %107 = vmatprep.subr.mxu0 0.0
    %108 = vmatpush1.msra.mxu0 %v67
    %109 = vmatprep.subr.mxu0 0.0
    %110 = vmatpush1.msra.mxu0 %v66
    %111 = vmatprep.subr.mxu0 0.0
    %112 = vmatpush1.msra.mxu0 %v65
    %113 = vmatprep.subr.mxu0 0.0
    %114 = vmatpush2.msra.mxu0 0.0
    %115 = vmatprep.subr.mxu0 0.0
    %116 = vmatpush2.msra.mxu0 0.0
    %117 = vmatprep.subr.mxu0 0.0
    %118 = vmatpush2.msra.mxu0 0.0
    %119 = vmatprep.subr.mxu0 0.0
    %120 = vmatpush2.msra.mxu0 0.0
    %121 = vmatprep.subr.mxu0 0.0
    %122 = vmatpush2.msra.mxu0 0.0
    %123 = vmatprep.subr.mxu0 0.0
    %124 = vmatpush2.msra.mxu0 0.0
    %125 = vmatprep.subr.mxu0 0.0
    %126 = vmatpush2.msra.mxu0 0.0
    %127 = vmatprep.subr.mxu0 0.0
    %128 = vmatpush2.msra.mxu0 0.0
    %129 = vmatprep.subr.mxu0 0.0
    %130 = vmatpush2.msra.mxu0 0.0
    %131 = vmatprep.subr.mxu0 0.0
    %132 = vmatpush2.msra.mxu0 0.0
    %133 = vmatprep.subr.mxu0 0.0
    %134 = vmatpush2.msra.mxu0 0.0
    %135 = vmatprep.subr.mxu0 0.0
    %136 = vmatpush2.msra.mxu0 0.0
    %137 = vmatprep.subr.mxu0 0.0
    %138 = vmatpush2.msra.mxu0 0.0
    %139 = vmatprep.subr.mxu0 0.0
    %140 = vmatpush2.msra.mxu0 0.0
    %141 = vmatprep.subr.mxu0 0.0
    %142 = vmatpush2.msra.mxu0 0.0
    %143 = vmatprep.subr.mxu0 0.0
    %144 = vmatpush2.msra.mxu0 0.0
    %145 = vmatprep.mubr.f32.mxu0 0.0
    %146 = vmatmul.mubr.f32.gmra.mxu0 %v63
    %v147 = vpop.f32.mrf.mxu0
    %v148 = vadd.f32 0.0, %v147
    %v149 = vpop.f32.mrf.mxu0
    %150 = vmatprep.mubr.f32.mxu0 0.0
    %151 = vmatmul.mubr.f32.gmra.mxu0 %v64
    %v152 = vpop.f32.mrf.mxu0
    %v153 = vadd.f32 0.0, %v152
    %v154 = vpop.f32.mrf.mxu0
    %155 = vdwg.mxu0
    %v156 = vld [vmem:[#allocation5] sm:$0xff]
    %v157 = vld [vmem:[#allocation5 + $0x8] sm:$0xff]
    %v158 = vld [vmem:[#allocation5 + $0x10] sm:$0xff]
    %v159 = vld [vmem:[#allocation5 + $0x18] sm:$0xff]
    %v160 = vld [vmem:[#allocation5 + $0x20] sm:$0xff]
    %v161 = vld [vmem:[#allocation5 + $0x28] sm:$0xff]
    %v162 = vld [vmem:[#allocation5 + $0x30] sm:$0xff]
    %v163 = vld [vmem:[#allocation5 + $0x38] sm:$0xff]
    %v164 = vld [vmem:[#allocation5 + $0x40] sm:$0xff]
    %v165 = vld [vmem:[#allocation5 + $0x48] sm:$0xff]
    %v166 = vld [vmem:[#allocation5 + $0x50] sm:$0xff]
    %v167 = vld [vmem:[#allocation5 + $0x58] sm:$0xff]
    %v168 = vld [vmem:[#allocation5 + $0x60] sm:$0xff]
    %v169 = vld [vmem:[#allocation5 + $0x68] sm:$0xff]
    %v170 = vld [vmem:[#allocation5 + $0x70] sm:$0xff]
    %v171 = vld [vmem:[#allocation5 + $0x78] sm:$0xff]
    %172 = vmatprep.subr.mxu0 0.0
    %173 = vmatpush1.msra.mxu0 %v171
    %174 = vmatprep.subr.mxu0 0.0
    %175 = vmatpush1.msra.mxu0 %v170
    %176 = vmatprep.subr.mxu0 0.0
    %177 = vmatpush1.msra.mxu0 %v169
    %178 = vmatprep.subr.mxu0 0.0
    %179 = vmatpush1.msra.mxu0 %v168
    %180 = vmatprep.subr.mxu0 0.0
    %181 = vmatpush1.msra.mxu0 %v167
    %182 = vmatprep.subr.mxu0 0.0
    %183 = vmatpush1.msra.mxu0 %v166
    %184 = vmatprep.subr.mxu0 0.0
    %185 = vmatpush1.msra.mxu0 %v165
    %186 = vmatprep.subr.mxu0 0.0
    %187 = vmatpush1.msra.mxu0 %v164
    %188 = vmatprep.subr.mxu0 0.0
    %189 = vmatpush1.msra.mxu0 %v163
    %190 = vmatprep.subr.mxu0 0.0
    %191 = vmatpush1.msra.mxu0 %v162
    %192 = vmatprep.subr.mxu0 0.0
    %193 = vmatpush1.msra.mxu0 %v161
    %194 = vmatprep.subr.mxu0 0.0
    %195 = vmatpush1.msra.mxu0 %v160
    %196 = vmatprep.subr.mxu0 0.0
    %197 = vmatpush1.msra.mxu0 %v159
    %198 = vmatprep.subr.mxu0 0.0
    %199 = vmatpush1.msra.mxu0 %v158
    %200 = vmatprep.subr.mxu0 0.0
    %201 = vmatpush1.msra.mxu0 %v157
    %202 = vmatprep.subr.mxu0 0.0
    %203 = vmatpush1.msra.mxu0 %v156
    %204 = vmatprep.subr.mxu0 0.0
    %205 = vmatpush2.msra.mxu0 0.0
    %206 = vmatprep.subr.mxu0 0.0
    %207 = vmatpush2.msra.mxu0 0.0
    %208 = vmatprep.subr.mxu0 0.0
    %209 = vmatpush2.msra.mxu0 0.0
    %210 = vmatprep.subr.mxu0 0.0
    %211 = vmatpush2.msra.mxu0 0.0
    %212 = vmatprep.subr.mxu0 0.0
    %213 = vmatpush2.msra.mxu0 0.0
    %214 = vmatprep.subr.mxu0 0.0
    %215 = vmatpush2.msra.mxu0 0.0
    %216 = vmatprep.subr.mxu0 0.0
    %217 = vmatpush2.msra.mxu0 0.0
    %218 = vmatprep.subr.mxu0 0.0
    %219 = vmatpush2.msra.mxu0 0.0
    %220 = vmatprep.subr.mxu0 0.0
    %221 = vmatpush2.msra.mxu0 0.0
    %222 = vmatprep.subr.mxu0 0.0
    %223 = vmatpush2.msra.mxu0 0.0
    %224 = vmatprep.subr.mxu0 0.0
    %225 = vmatpush2.msra.mxu0 0.0
    %226 = vmatprep.subr.mxu0 0.0
    %227 = vmatpush2.msra.mxu0 0.0
    %228 = vmatprep.subr.mxu0 0.0
    %229 = vmatpush2.msra.mxu0 0.0
    %230 = vmatprep.subr.mxu0 0.0
    %231 = vmatpush2.msra.mxu0 0.0
    %232 = vmatprep.subr.mxu0 0.0
    %233 = vmatpush2.msra.mxu0 0.0
    %234 = vmatprep.subr.mxu0 0.0
    %235 = vmatpush2.msra.mxu0 0.0
    %236 = vmatprep.mubr.f32.mxu0 0.0
    %237 = vmatmul.mubr.f32.gmra.mxu0 %v148
    %v238 = vpop.f32.mrf.mxu0
    %v239 = vadd.f32 0.0, %v238
    %v240 = vpop.f32.mrf.mxu0
    %241 = vmatprep.mubr.f32.mxu0 0.0
    %242 = vmatmul.mubr.f32.gmra.mxu0 %v153
    %v243 = vpop.f32.mrf.mxu0
    %v244 = vadd.f32 0.0, %v243
    %v245 = vpop.f32.mrf.mxu0
    %246 = vdwg.mxu0
    %v247 = vadd.f32 %v63, %v239
    %v248 = vadd.f32 %v64, %v244
    %v249 = vld [vmem:[%s4] sm:$0x1]
    %v251 = vlaneseq
    %v252 = vshrl.u32 %v251, 7
    %v253 = vsub.s32 0, %v252
    %v254 = vrot.slane %v249, %v253
    %v256 = vadd.f32 %v247, %v254
    %v257 = vadd.f32 %v248, %v254
    %258 = vst [vmem:[#allocation7] sm:$0xff] %v256
    %259 = vst [vmem:[#allocation7 + $0x8] sm:$0xff] %v257
    // Predicated region
    $region30: #{tpu_custom_call.1} parent=1 // pred_check
      _
    $region31: #{tpu_custom_call.1} parent=1 // pred_check_branch
      %261 = sbr.rel (0) target = $region33
    $region32: #{tpu_custom_call.1} parent=1 // pred_region
      %s263 = ssub.s32 256, 256
      %264 = vsyncadd [#allocation4], %s263
      %s265 = sshll.u32 [#allocation7], 4
      %s266 = int_to_ptr.vmem [resolvable:$true] %s265
      %271 = dma.vmem_to_hbm [thread:$0]  %s266, 256, %s5, [#allocation4], 128, 128, 8
    $region33: #{tpu_custom_call.1} parent=1 // pred_fallthru
      _
    // Predicated region
    $region34: #{tpu_custom_call.1} parent=1 // pred_check
      _
    $region35: #{tpu_custom_call.1} parent=1 // pred_check_branch
      %273 = sbr.rel (0) target = $region37
    $region36: #{tpu_custom_call.1} parent=1 // pred_region
      %274 = dma.done [#allocation4], 256
    $region37: #{tpu_custom_call.1} parent=1 // pred_fallthru
      _
    %275 = vsyncpa [#allocation3], 1
    %276 = vsyncpa [#allocation6], 1
    %277 = vsyncpa [#allocation4], 1

</llo_original>
